<compile_context>
chip_gen: v7x
topology: tpu7x:2x2x1
jax: 0.10.0
libtpu: 0.0.40
codegen_flags: <defaults>
</compile_context>

<pallas_src>
import math
from functools import partial

import jax
import jax.numpy as jnp
from jax.experimental import pallas as pl
from jax.experimental.pallas import tpu as pltpu


def _layer_scale_kernel(x_ref, gamma_ref, o_ref):
    # Pure VPU broadcast multiply: gamma (1, lane_tile) broadcasts over the
    # sublanes of the (tile, lane_tile) x block. No MXU/XLU/EUP involvement.
    o_ref[...] = x_ref[...] * gamma_ref[...]


def _sublane_pack(dtype) -> int:
    # Sub-32-bit dtypes pack along sublanes: 8 rows (f32), 16 (bf16/f16),
    # 32 (int8/fp8). Row tiles are kept multiples of this for dense vld/vst.
    itemsize = jnp.dtype(dtype).itemsize
    return max(8, 32 // max(itemsize, 1))


def _tpu_vmem_capacity_bytes() -> int:
    # Trace-time hardware query; fall back to the smallest (v7x-sized) VMEM if
    # the query is unavailable so tiling stays safe everywhere.
    try:
        return int(pltpu.get_tpu_info().vmem_capacity_bytes)
    except Exception:
        return 64 << 20


def layer_scale(x: jax.Array, gamma: jax.Array, *,
                target_block_bytes: int | None = None,
                donate: bool = False,
                fold_lanes: bool = True) -> jax.Array:
    """Apply y = x * gamma over the last axis of x.  x: (..., D); gamma: (D,)."""
    orig_shape = x.shape
    D = orig_shape[-1]
    assert gamma.shape == (D,), f"gamma must have shape ({D},), got {gamma.shape}"

    dtype = x.dtype
    itemsize = jnp.dtype(dtype).itemsize
    pack = _sublane_pack(dtype)

    # Flatten all leading axes into a row axis.
    R = int(math.prod(orig_shape[:-1])) if orig_shape[:-1] else 1

    # ---- Generation-aware budgets -------------------------------------------
    vmem_capacity = _tpu_vmem_capacity_bytes()
    is_small_vmem = vmem_capacity <= (64 << 20)          # v7x-like (also 2 TCs)
    vmem_cap = max(vmem_capacity - (16 << 20), 32 << 20)  # headroom for Mosaic
    if target_block_bytes is None:
        # Bigger blocks on v7x: at 3.2 TB/s a 4 MiB block drains in ~2.5 us, so
        # the ~0.35 us per-step overhead is no longer negligible.
        target_block_bytes = (8 << 20) if is_small_vmem else (4 << 20)
    margin = 2 << 20
    # 2x double-buffered input + 2x output + gamma (small) must fit the cap.
    block_budget = max(pack * 128 * itemsize,
                       min(int(target_block_bytes), (vmem_cap - margin) // 5))

    # ---- Lane-dense folding for non-128-multiple D ---------------------------
    k = 1
    pad_rows = 0
    if fold_lanes and D % 128 != 0:
        k = 128 // math.gcd(D, 128)
        pad_rows = (-R) % k  # pad rows (cheap) instead of falling back to k=1
    rows = (R + pad_rows) // k
    lanes = D * k

    x2d = x.reshape(R, D)
    if pad_rows:
        x2d = jnp.pad(x2d, ((0, pad_rows), (0, 0)))
    if k > 1:
        x2d = x2d.reshape(rows, lanes)

    gamma_row = gamma.astype(dtype)
    if k > 1:
        gamma_row = jnp.tile(gamma_row, k)
    gamma2d = gamma_row.reshape(1, lanes)

    # ---- Tile selection (2-D grid: rows x lane tiles) -------------------------
    if pack * lanes * itemsize > block_budget and lanes % 128 == 0:
        # Very wide D: split the lane axis so blocks stay in the few-MiB sweet
        # spot instead of a single pack-row block blowing past VMEM.
        lane_tile = max(128, (block_budget // (pack * itemsize)) // 128 * 128)
        lane_tile = min(lane_tile, lanes)
    else:
        lane_tile = lanes

    tile = max(pack, (block_budget // (lane_tile * itemsize)) // pack * pack)
    if tile >= rows:
        tile = rows
        # v7x has 2 TensorCores: a grid of 1 leaves one idle, so split medium
        # inputs into two row blocks (no effect on single-TC chips).
        if is_small_vmem and rows >= 2 * pack and lane_tile == lanes:
            tile = max(pack, pl.cdiv(pl.cdiv(rows, 2), pack) * pack)

    grid = (pl.cdiv(rows, tile), pl.cdiv(lanes, lane_tile))

    block_bytes = tile * lane_tile * itemsize
    gamma_blk_bytes = pack * lane_tile * itemsize  # (1, lane_tile) pads to `pack` sublanes
    vmem_limit = int(min(max(4 * block_bytes + 2 * gamma_blk_bytes + margin, 32 << 20),
                         vmem_cap))

    cost = pl.CostEstimate(
        flops=rows * lanes,
        transcendentals=0,
        bytes_accessed=2 * rows * lanes * itemsize + lanes * itemsize,
    )

    out2d = pl.pallas_call(
        _layer_scale_kernel,
        out_shape=jax.ShapeDtypeStruct((rows, lanes), dtype),
        grid_spec=pltpu.PrefetchScalarGridSpec(
            num_scalar_prefetch=0,
            grid=grid,
            in_specs=[
                pl.BlockSpec((tile, lane_tile), lambda i, j: (i, j)),
                pl.BlockSpec((1, lane_tile), lambda i, j: (0, j)),  # gamma resident per lane tile
            ],
            out_specs=pl.BlockSpec((tile, lane_tile), lambda i, j: (i, j)),
        ),
        compiler_params=pltpu.CompilerParams(
            dimension_semantics=("parallel", "parallel"),
            vmem_limit_bytes=vmem_limit,
        ),
        cost_estimate=cost,
        input_output_aliases=({0: 0} if donate else {}),
    )(x2d, gamma2d)

    if k > 1:
        out2d = out2d.reshape(rows * k, D)
    if pad_rows:
        out2d = out2d[:R]
    return out2d.reshape(orig_shape)


if __name__ == "__main__":
    key = jax.random.PRNGKey(0)
    init_values = 1e-5

    # Primary check: small shapes consistent with the module (batch=2, seq=8, dim=32).
    B, N, D = 2, 8, 32
    x = jax.random.normal(key, (B, N, D), dtype=jnp.float32)
    gamma = init_values * jnp.ones((D,), dtype=jnp.float32)  # nn.Parameter(init_values * ones(dim))

    y = layer_scale(x, gamma)
    jax.block_until_ready(y)
    assert y.shape == x.shape and y.dtype == x.dtype
    assert jnp.allclose(y, x * gamma, rtol=1e-6, atol=1e-6)

    # Ragged-grid check: tiny per-block budget -> cdiv grid with a partial last block.
    x2 = jax.random.normal(jax.random.PRNGKey(1), (2, 72, 32), dtype=jnp.float32)
    y2 = layer_scale(x2, gamma, target_block_bytes=4096)
    jax.block_until_ready(y2)
    assert jnp.allclose(y2, x2 * gamma, rtol=1e-6, atol=1e-6)

    # Row-padding check: R not a multiple of the lane-fold factor (fold kept, rows padded).
    x3 = jax.random.normal(jax.random.PRNGKey(2), (2, 9, 32), dtype=jnp.float32)
    y3 = layer_scale(x3, gamma)
    jax.block_until_ready(y3)
    assert jnp.allclose(y3, x3 * gamma, rtol=1e-6, atol=1e-6)

    # Donation check (approximates the PyTorch inplace=True path): aliased output.
    D4 = 128
    gamma4 = init_values * jnp.ones((D4,), dtype=jnp.float32)
    x4 = jax.random.normal(jax.random.PRNGKey(3), (4, 64, D4), dtype=jnp.float32)
    ref4 = x4 * gamma4
    donating = jax.jit(partial(layer_scale, donate=True), donate_argnums=(0,))
    y4 = donating(x4, gamma4)
    jax.block_until_ready(y4)
    assert jnp.allclose(y4, ref4, rtol=1e-6, atol=1e-6)

    print("KERNEL_OK")
</pallas_src>

<mosaic_0001>
module attributes {stable_mosaic.version = 11 : i64} {
  func.func @_layer_scale_kernel(%arg0: i32, %arg1: i32, %arg2: memref<4x128xf32, #tpu.memory_space<vmem>>, %arg3: memref<1x128xf32, #tpu.memory_space<vmem>>, %arg4: memref<4x128xf32, #tpu.memory_space<vmem>>) attributes {dimension_semantics = [#tpu.dimension_semantics<parallel>, #tpu.dimension_semantics<parallel>], iteration_bounds = array<i64: 1, 1>, scalar_prefetch = 0 : i64, scratch_operands = 0 : i64, tpu.core_type = #tpu.core_type<tc>, window_params = [{transform_indices = @transform_0, window_bounds = array<i64: 4, 128>}, {transform_indices = @transform_1, window_bounds = array<i64: 1, 128>}, {transform_indices = @transform_2, window_bounds = array<i64: 4, 128>}]} {
    %c0 = arith.constant 0 : index
    %c0_0 = arith.constant 0 : index
    %0 = vector.load %arg2[%c0, %c0_0] : memref<4x128xf32, #tpu.memory_space<vmem>>, vector<4x128xf32>
    %c0_1 = arith.constant 0 : index
    %c0_2 = arith.constant 0 : index
    %1 = vector.load %arg3[%c0_1, %c0_2] : memref<1x128xf32, #tpu.memory_space<vmem>>, vector<1x128xf32>
    %2 = vector.broadcast %1 : vector<1x128xf32> to vector<4x128xf32>
    %3 = arith.mulf %0, %2 : vector<4x128xf32>
    %c0_3 = arith.constant 0 : index
    %c0_4 = arith.constant 0 : index
    %4 = vector.load %arg4[%c0_3, %c0_4] : memref<4x128xf32, #tpu.memory_space<vmem>>, vector<4x128xf32>
    tpu.vector_store %arg4[%c0_3, %c0_4], %3 {strides = array<i32>} : memref<4x128xf32, #tpu.memory_space<vmem>>, vector<4x128xf32>,
    return
  }
  func.func @transform_0(%arg0: i32, %arg1: i32) -> (i32, i32) {
    %c0_i32 = arith.constant 0 : i32
    return %arg0, %arg1 : i32, i32
  }
  func.func @transform_1(%arg0: i32, %arg1: i32) -> (i32, i32) {
    %c0_i32 = arith.constant 0 : i32
    %c0_i32_0 = arith.constant 0 : i32
    return %c0_i32, %arg1 : i32, i32
  }
  func.func @transform_2(%arg0: i32, %arg1: i32) -> (i32, i32) {
    %c0_i32 = arith.constant 0 : i32
    return %arg0, %arg1 : i32, i32
  }
}

</mosaic_0001>

<llo_original>
// kernel: tpu_custom_call.1
$region0: #{tpu_custom_call.1}
  #allocation0 [shape = 'u32[]', space=smem, size = 0x4, offset = 0x4, fixed_abs, tag = 'smem constant byte address 0x4 - core index']
  #allocation1 [shape = 'u32[144,128]{1,0:T(1,128)}', space=vmem, size = 0x12000, scoped, tag = 'internal scratch']
  %s0 = inlined_call_operand.hbm [shape: f32[4,128], index: 0, kind: input, shape index: {}]
  %s1 = inlined_call_operand.vmem [shape: f32[1,128], index: 1, kind: input, shape index: {}]
  %s2 = inlined_call_operand.hbm [shape: f32[4,128], index: 2, kind: output, shape index: {}]
  %s3 = sld [smem:[#allocation0]]
  $region22: #{tpu_custom_call.1} parent=0
    _
  %s5 = ssub.s32 1, %s3
  %s6 = scalar_select 0, %s5, %s3
  $region1: #{tpu_custom_call.1} parent=0
    #allocation2 [shape = 'u8[2048]{0}', space=vmem, size = 0x800, scoped, tag = 'input window, operand 0, single buffered']
    #allocation3 [shape = 's32[1]{0}', space=sflag, size = 0x4, scoped, tag = 'scoped memory for tpu_custom_call.1']
    #allocation4 [shape = 's32[1]{0}', space=sflag, size = 0x4, scoped, tag = 'scoped memory for tpu_custom_call.1']
    #allocation5 [shape = 'u8[2048]{0}', space=vmem, size = 0x800, scoped, tag = 'output window, operand 0, single buffered']
    %7 = vsyncpa [#allocation3], 0
    %8 = vsyncpa [#allocation4], 0
    // Predicated region
    $region2: #{tpu_custom_call.1} parent=1 // pred_check
      _
    $region3: #{tpu_custom_call.1} parent=1 // pred_check_branch
      %10 = sbr.rel (0) target = $region5
    $region4: #{tpu_custom_call.1} parent=1 // pred_region
      %s12 = ssub.s32 64, 64
      %13 = vsyncadd [#allocation3], %s12
      %s15 = sshll.u32 [#allocation2], 4
      %s16 = int_to_ptr.vmem [resolvable:$true] %s15
      %18 = dma.hbm_to_vmem [thread:$0]  %s0, 64, %s16, [#allocation3]
    $region5: #{tpu_custom_call.1} parent=1 // pred_fallthru
      _
    // Predicated region
    $region6: #{tpu_custom_call.1} parent=1 // pred_check
      _
    $region7: #{tpu_custom_call.1} parent=1 // pred_check_branch
      %20 = sbr.rel (0) target = $region9
    $region8: #{tpu_custom_call.1} parent=1 // pred_region
      _
    $region9: #{tpu_custom_call.1} parent=1 // pred_fallthru
      _
    // Predicated region
    $region10: #{tpu_custom_call.1} parent=1 // pred_check
      _
    $region11: #{tpu_custom_call.1} parent=1 // pred_check_branch
      %22 = sbr.rel (0) target = $region13
    $region12: #{tpu_custom_call.1} parent=1 // pred_region
      %23 = dma.done [#allocation3], 64
    $region13: #{tpu_custom_call.1} parent=1 // pred_fallthru
      _
    %v24 = vld [vmem:[#allocation2] sm:$0xf]
    %v25 = vld [vmem:[%s1] sm:$0x1]
    %v27 = vlaneseq
    %v28 = vshrl.u32 %v27, 7
    %v29 = vsub.s32 0, %v28
    %v30 = vrot.slane %v25, %v29
    %v32 = vmul.f32 %v24, %v30
    %33 = vst [vmem:[#allocation5] sm:$0xf] %v32
    // Predicated region
    $region14: #{tpu_custom_call.1} parent=1 // pred_check
      _
    $region15: #{tpu_custom_call.1} parent=1 // pred_check_branch
      %35 = sbr.rel (0) target = $region17
    $region16: #{tpu_custom_call.1} parent=1 // pred_region
      %s37 = ssub.s32 64, 64
      %38 = vsyncadd [#allocation4], %s37
      %s40 = sshll.u32 [#allocation5], 4
      %s41 = int_to_ptr.vmem [resolvable:$true] %s40
      %43 = dma.vmem_to_hbm [thread:$0]  %s41, 64, %s2, [#allocation4]
    $region17: #{tpu_custom_call.1} parent=1 // pred_fallthru
      _
    // Predicated region
    $region18: #{tpu_custom_call.1} parent=1 // pred_check
      _
    $region19: #{tpu_custom_call.1} parent=1 // pred_check_branch
      %45 = sbr.rel (0) target = $region21
    $region20: #{tpu_custom_call.1} parent=1 // pred_region
      %46 = dma.done [#allocation4], 64
    $region21: #{tpu_custom_call.1} parent=1 // pred_fallthru
      _
    %47 = vsyncpa [#allocation3], 1
    %48 = vsyncpa [#allocation4], 1

</llo_original>
